<compile_context>
chip_gen: v7x
topology: tpu7x:2x2x1
jax: 0.10.0
libtpu: 0.0.40
codegen_flags: <defaults>
</compile_context>

<pallas_src>
from typing import NamedTuple

import jax
import jax.numpy as jnp
from jax.experimental import pallas as pl
from jax.experimental.pallas import tpu as pltpu

_LANE = 128  # vreg lane width


def _round_up(n, m):
    return ((n + m - 1) // m) * m


def _sublane_rows(dtype):
    # Rows needed to fill a packed sublane group: f32 -> 8, bf16 -> 16, int8 -> 32.
    return 8 * max(1, 4 // jnp.dtype(dtype).itemsize)


def _chip_info():
    try:
        kind = jax.devices()[0].device_kind.lower()
    except Exception:
        kind = ""
    if "v5 lite" in kind or "v5e" in kind or "v5litepod" in kind:
        return dict(gen="v5e", num_tc=1, phys_vmem=128 << 20,
                    scoped_default=16 << 20, tile_cap=256)
    if "v7" in kind or "7x" in kind:
        return dict(gen="v7x", num_tc=2, phys_vmem=64 << 20,
                    scoped_default=32 << 20, tile_cap=512)
    # v6e and anything unknown: v6e-like defaults.
    return dict(gen="v6e", num_tc=1, phys_vmem=128 << 20,
                scoped_default=32 << 20, tile_cap=512)


class PreparedParams(NamedTuple):
    w1: jax.Array   # (Dp, Hp), MXU dtype, lane-dense zero-padded
    b1: jax.Array   # (1, Hp), float32
    w2: jax.Array   # (Hp, Dp), MXU dtype
    b2: jax.Array   # (1, Dp), float32
    d: int          # original feature dim
    h: int          # original hidden dim


def prepare_params(params, *, use_bf16_matmul=True):
    """Pad & cast the velocity-field MLP weights ONCE per solver run.

    Hoists the lane-dense zero padding + bf16 cast out of the per-step call so
    repeated ODE-solver evaluations don't re-read/re-write the weights."""
    w1, b1, w2, b2 = params
    D, H = w1.shape
    Dp, Hp = _round_up(D, _LANE), _round_up(H, _LANE)
    wdt = jnp.bfloat16 if use_bf16_matmul else jnp.float32
    f32 = jnp.float32
    # TODO(synk): on v7x an fp8(e4m3)+per-matrix-scale weight path would halve
    # weight bytes and ~double MXU throughput; needs a velocity-field accuracy check.
    w1p = jnp.zeros((Dp, Hp), wdt).at[:D, :H].set(w1.astype(wdt))
    b1p = jnp.zeros((1, Hp), f32).at[:, :H].set(b1.reshape(1, H).astype(f32))
    w2p = jnp.zeros((Hp, Dp), wdt).at[:H, :D].set(w2.astype(wdt))
    b2p = jnp.zeros((1, Dp), f32).at[:, :D].set(b2.reshape(1, D).astype(f32))
    return PreparedParams(w1p, b1p, w2p, b2p, D, H)


def _make_vf_kernel(n_chunks, h_chunk, mxu_dtype):
    def kernel(x_ref, w1_ref, b1_ref, w2_ref, b2_ref, o_ref):
        # Cast activations to the MXU dtype in-kernel (VPU op; avoids an extra
        # HBM round trip of a pre-cast copy of x).
        x = x_ref[...].astype(mxu_dtype)
        acc = None
        # Static chunking over the hidden dim: the 2nd matmul of chunk c can
        # overlap (in the VLIW schedule) with the EUP tanh of chunk c+1, and
        # the live f32 `h` intermediate is bounded to (tb, h_chunk).
        for c in range(n_chunks):
            lo, hi = c * h_chunk, (c + 1) * h_chunk
            h = jnp.dot(x, w1_ref[:, lo:hi], preferred_element_type=jnp.float32)
            h = jnp.tanh(h + b1_ref[:, lo:hi])
            part = jnp.dot(h.astype(mxu_dtype), w2_ref[lo:hi, :],
                           preferred_element_type=jnp.float32)
            acc = part if acc is None else acc + part
        o_ref[...] = (acc + b2_ref[...]).astype(o_ref.dtype)
    return kernel


def _resident_spec(shape):
    # Weights/biases have a constant index_map -> a single VMEM buffer is
    # enough (halves resident-weight VMEM vs. default double buffering).
    index_map = lambda i: (0, 0)
    try:
        return pl.BlockSpec(shape, index_map, pipeline_mode=pl.Buffered(1))
    except TypeError:  # older jax without pipeline_mode kwarg
        return pl.BlockSpec(shape, index_map)


def _vmem_bytes(tb, Dp, Hp, h_chunk, itm_x, itm_w, itm_o):
    n = 0
    n += 2 * tb * Dp * itm_x            # x tile (double buffered)
    n += 2 * tb * Dp * itm_o            # out tile (double buffered)
    n += (Dp * Hp + Hp * Dp) * itm_w    # W1, W2 (single buffered)
    n += (Hp + Dp) * 4                  # biases (f32)
    n += tb * h_chunk * (4 + itm_w)     # live f32 h chunk + its MXU-dtype copy
    n += tb * Dp * 4                    # f32 accumulator
    return n


def ode_wrapper_no_time(t, x, params, *, tile_b=None, use_bf16_matmul=True,
                        out_dtype=None, h_chunk=None):
    """Forward of ODEwrapperNoTime: dx/dt = func(x). `t` is ignored.

    `params` may be the raw (w1, b1, w2, b2) tuple or a PreparedParams from
    prepare_params() (preferred inside a solver loop)."""
    del t  # ODEwrapperNoTime discards the time argument.
    if not isinstance(params, PreparedParams):
        params = prepare_params(params, use_bf16_matmul=use_bf16_matmul)
    w1p, b1p, w2p, b2p, D, _H = params
    Dp, Hp = w1p.shape
    mxu_dtype = w1p.dtype

    B, Dx = x.shape
    assert Dx == D, (Dx, D)
    out_dtype = jnp.dtype(x.dtype if out_dtype is None else out_dtype)

    info = _chip_info()
    # Sublane alignment for the batch-tile row count, keyed off the dtypes that
    # actually live in (tb, Dp) HBM tiles (x and out), so bf16 tiles are
    # 16-row aligned and stores stay unmasked full-width vsts.
    sub = max(_sublane_rows(x.dtype), _sublane_rows(out_dtype))

    if tile_b is None:
        tile_b = info["tile_cap"]
    tb = min(int(tile_b), info["tile_cap"])
    if info["num_tc"] > 1:
        # Keep >=2 grid steps so both v7x TensorCores get work.
        tb = min(tb, _round_up(pl.cdiv(B, info["num_tc"]), sub))
    else:
        # Single TensorCore: grid is a sequential loop -> one step if it fits.
        tb = min(tb, _round_up(B, sub))
    tb = max(tb, sub)

    # Hidden-dim chunking (bounds the live f32 intermediate; overlaps MXU/EUP).
    if h_chunk is None:
        h_chunk = 256 if (Hp > 256 and Hp % 256 == 0) else Hp
    assert Hp % h_chunk == 0 and h_chunk % _LANE == 0
    n_chunks = Hp // h_chunk

    itm_x = jnp.dtype(x.dtype).itemsize
    itm_w = jnp.dtype(mxu_dtype).itemsize
    itm_o = out_dtype.itemsize

    # Shrink the batch tile until the footprint fits comfortably in VMEM.
    budget = info["phys_vmem"] - (8 << 20)
    while tb > sub and _vmem_bytes(tb, Dp, Hp, h_chunk, itm_x, itm_w, itm_o) > budget:
        tb = max(sub, (tb // 2) // sub * sub)

    Bp = _round_up(B, tb)
    grid = (Bp // tb,)

    # Explicit scoped-VMEM limit with headroom (the default is 16/32 MiB, not
    # the 128/64 MiB physical -> big tiles at production widths otherwise OOM).
    needed = _vmem_bytes(tb, Dp, Hp, h_chunk, itm_x, itm_w, itm_o)
    vmem_limit = int(min(budget, max(info["scoped_default"], int(needed * 1.5))))

    # Fast path: skip the activation zero-pad / output slice when aligned.
    aligned = (Bp == B) and (Dp == D)
    if aligned:
        xp = x
    else:
        xp = jnp.zeros((Bp, Dp), x.dtype).at[:B, :D].set(x)

    cost = pl.CostEstimate(
        flops=4 * Bp * Dp * Hp,                      # two matmuls, 2 flops/MAC
        transcendentals=Bp * Hp,                     # tanh
        bytes_accessed=(Bp * Dp * itm_x              # x in
                        + 2 * Dp * Hp * itm_w        # W1, W2
                        + (Hp + Dp) * 4              # biases
                        + Bp * Dp * itm_o),          # out
    )

    out = pl.pallas_call(
        _make_vf_kernel(n_chunks, h_chunk, mxu_dtype),
        out_shape=jax.ShapeDtypeStruct((Bp, Dp), out_dtype),
        grid=grid,
        in_specs=[
            pl.BlockSpec((tb, Dp), lambda i: (i, 0)),   # x tile
            _resident_spec((Dp, Hp)),                   # W1 (resident, 1 buffer)
            _resident_spec((1, Hp)),                    # b1
            _resident_spec((Hp, Dp)),                   # W2 (resident, 1 buffer)
            _resident_spec((1, Dp)),                    # b2
        ],
        out_specs=pl.BlockSpec((tb, Dp), lambda i: (i, 0)),
        compiler_params=pltpu.CompilerParams(
            dimension_semantics=("parallel",),
            vmem_limit_bytes=vmem_limit,
        ),
        cost_estimate=cost,
    )(xp, w1p, b1p, w2p, b2p)

    if aligned:
        return out
    return out[:B, :D]


def _reference(x, params):
    w1, b1, w2, b2 = params
    xf = x.astype(jnp.float32)
    h = jnp.tanh(xf @ w1.astype(jnp.float32) + b1.astype(jnp.float32).reshape(1, -1))
    out = h @ w2.astype(jnp.float32) + b2.astype(jnp.float32).reshape(1, -1)
    return out.astype(x.dtype)


if __name__ == "__main__":
    def make_problem(key, B, D, H):
        kx, k1, k2, k3, k4 = jax.random.split(key, 5)
        x = jax.random.normal(kx, (B, D), dtype=jnp.float32)
        w1 = jax.random.normal(k1, (D, H), dtype=jnp.float32) * 0.1
        b1 = jax.random.normal(k2, (1, H), dtype=jnp.float32) * 0.01
        w2 = jax.random.normal(k3, (H, D), dtype=jnp.float32) * 0.1
        b2 = jax.random.normal(k4, (1, D), dtype=jnp.float32) * 0.01
        return x, (w1, b1, w2, b2)

    t = jnp.float32(0.5)  # ignored by ODEwrapperNoTime

    # 1) Typical solver use: prepare weights once, evaluate the field several
    #    times reusing the prepared (padded, bf16) operands.
    x, params = make_problem(jax.random.PRNGKey(0), B=16, D=32, H=64)
    prepped = prepare_params(params, use_bf16_matmul=True)
    dxdt = None
    for _ in range(3):  # a few "solver stages"
        dxdt = ode_wrapper_no_time(t, x, prepped)
    dxdt = jax.block_until_ready(dxdt)
    ref = _reference(x, params)
    assert dxdt.shape == x.shape and dxdt.dtype == x.dtype
    # bf16 MXU inputs with f32 accumulation -> ~bf16-eps level error vs f32 ref.
    assert jnp.allclose(dxdt, ref, atol=2e-2, rtol=2e-2), (
        float(jnp.max(jnp.abs(dxdt - ref))))

    # 2) Exact-precision path (f32 MXU inputs, raw params) at tight tolerance.
    dxdt_f32 = jax.block_until_ready(
        ode_wrapper_no_time(t, x, params, use_bf16_matmul=False))
    assert jnp.allclose(dxdt_f32, ref, atol=1e-5, rtol=1e-5)

    # 3) Hidden-dim chunked path (2 chunks of 128).
    x3, params3 = make_problem(jax.random.PRNGKey(1), B=16, D=32, H=256)
    out3 = jax.block_until_ready(
        ode_wrapper_no_time(t, x3, prepare_params(params3), h_chunk=128))
    assert jnp.allclose(out3, _reference(x3, params3), atol=5e-2, rtol=5e-2)

    # 4) Lane/batch-aligned fast path (no x pad, no output slice).
    x4, params4 = make_problem(jax.random.PRNGKey(2), B=32, D=128, H=128)
    out4 = jax.block_until_ready(
        ode_wrapper_no_time(t, x4, prepare_params(params4)))
    assert out4.shape == x4.shape and out4.dtype == x4.dtype
    assert jnp.allclose(out4, _reference(x4, params4), atol=5e-2, rtol=5e-2)

    print("KERNEL_OK")
</pallas_src>

<mosaic_0001>
module attributes {stable_mosaic.version = 11 : i64} {
  func.func @kernel(%arg0: i32, %arg1: memref<16x128xf32, #tpu.memory_space<vmem>>, %arg2: memref<128x128xbf16, #tpu.memory_space<vmem>>, %arg3: memref<1x128xf32, #tpu.memory_space<vmem>>, %arg4: memref<128x128xbf16, #tpu.memory_space<vmem>>, %arg5: memref<1x128xf32, #tpu.memory_space<vmem>>, %arg6: memref<16x128xf32, #tpu.memory_space<vmem>>) attributes {dimension_semantics = [#tpu.dimension_semantics<parallel>], iteration_bounds = array<i64: 1>, scalar_prefetch = 0 : i64, scratch_operands = 0 : i64, tpu.core_type = #tpu.core_type<tc>, window_params = [{transform_indices = @transform_0, window_bounds = array<i64: 16, 128>}, {pipeline_mode = #tpu.pipeline_mode<synchronous>, transform_indices = @transform_1, window_bounds = array<i64: 128, 128>}, {pipeline_mode = #tpu.pipeline_mode<synchronous>, transform_indices = @transform_2, window_bounds = array<i64: 1, 128>}, {pipeline_mode = #tpu.pipeline_mode<synchronous>, transform_indices = @transform_3, window_bounds = array<i64: 128, 128>}, {pipeline_mode = #tpu.pipeline_mode<synchronous>, transform_indices = @transform_4, window_bounds = array<i64: 1, 128>}, {transform_indices = @transform_5, window_bounds = array<i64: 16, 128>}]} {
    %c0 = arith.constant 0 : index
    %c0_0 = arith.constant 0 : index
    %0 = vector.load %arg1[%c0, %c0_0] : memref<16x128xf32, #tpu.memory_space<vmem>>, vector<16x128xf32>
    %1 = arith.truncf %0 : vector<16x128xf32> to vector<16x128xbf16>
    %c0_1 = arith.constant 0 : index
    %c0_2 = arith.constant 0 : index
    %2 = vector.load %arg2[%c0_1, %c0_2] : memref<128x128xbf16, #tpu.memory_space<vmem>>, vector<128x128xbf16>
    %cst = arith.constant dense<0.000000e+00> : vector<16x128xf32>
    %3 = tpu.matmul %1, %2, %cst {dimension_numbers = #tpu.dot_dimension_numbers<[1], [0], [0], [1], [0, 0, 1, 1], [], []>} : vector<16x128xbf16>, vector<128x128xbf16>, vector<16x128xf32> -> vector<16x128xf32>
    %c0_3 = arith.constant 0 : index
    %c0_4 = arith.constant 0 : index
    %4 = vector.load %arg3[%c0_3, %c0_4] : memref<1x128xf32, #tpu.memory_space<vmem>>, vector<1x128xf32>
    %5 = vector.broadcast %4 : vector<1x128xf32> to vector<16x128xf32>
    %6 = arith.addf %3, %5 : vector<16x128xf32>
    %7 = math.tanh %6 : vector<16x128xf32>
    %8 = arith.truncf %7 : vector<16x128xf32> to vector<16x128xbf16>
    %c0_5 = arith.constant 0 : index
    %c0_6 = arith.constant 0 : index
    %9 = vector.load %arg4[%c0_5, %c0_6] : memref<128x128xbf16, #tpu.memory_space<vmem>>, vector<128x128xbf16>
    %cst_7 = arith.constant dense<0.000000e+00> : vector<16x128xf32>
    %10 = tpu.matmul %8, %9, %cst_7 {dimension_numbers = #tpu.dot_dimension_numbers<[1], [0], [0], [1], [0, 0, 1, 1], [], []>} : vector<16x128xbf16>, vector<128x128xbf16>, vector<16x128xf32> -> vector<16x128xf32>
    %c0_8 = arith.constant 0 : index
    %c0_9 = arith.constant 0 : index
    %11 = vector.load %arg5[%c0_8, %c0_9] : memref<1x128xf32, #tpu.memory_space<vmem>>, vector<1x128xf32>
    %12 = vector.broadcast %11 : vector<1x128xf32> to vector<16x128xf32>
    %13 = arith.addf %10, %12 : vector<16x128xf32>
    %c0_10 = arith.constant 0 : index
    %c0_11 = arith.constant 0 : index
    %14 = vector.load %arg6[%c0_10, %c0_11] : memref<16x128xf32, #tpu.memory_space<vmem>>, vector<16x128xf32>
    tpu.vector_store %arg6[%c0_10, %c0_11], %13 {strides = array<i32>} : memref<16x128xf32, #tpu.memory_space<vmem>>, vector<16x128xf32>,
    return
  }
  func.func @transform_0(%arg0: i32) -> (i32, i32) {
    %c0_i32 = arith.constant 0 : i32
    %c0_i32_0 = arith.constant 0 : i32
    return %arg0, %c0_i32 : i32, i32
  }
  func.func @transform_1(%arg0: i32) -> (i32, i32) {
    %c0_i32 = arith.constant 0 : i32
    %c0_i32_0 = arith.constant 0 : i32
    %c0_i32_1 = arith.constant 0 : i32
    return %c0_i32, %c0_i32_0 : i32, i32
  }
  func.func @transform_2(%arg0: i32) -> (i32, i32) {
    %c0_i32 = arith.constant 0 : i32
    %c0_i32_0 = arith.constant 0 : i32
    %c0_i32_1 = arith.constant 0 : i32
    return %c0_i32, %c0_i32_0 : i32, i32
  }
  func.func @transform_3(%arg0: i32) -> (i32, i32) {
    %c0_i32 = arith.constant 0 : i32
    %c0_i32_0 = arith.constant 0 : i32
    %c0_i32_1 = arith.constant 0 : i32
    return %c0_i32, %c0_i32_0 : i32, i32
  }
  func.func @transform_4(%arg0: i32) -> (i32, i32) {
    %c0_i32 = arith.constant 0 : i32
    %c0_i32_0 = arith.constant 0 : i32
    %c0_i32_1 = arith.constant 0 : i32
    return %c0_i32, %c0_i32_0 : i32, i32
  }
  func.func @transform_5(%arg0: i32) -> (i32, i32) {
    %c0_i32 = arith.constant 0 : i32
    %c0_i32_0 = arith.constant 0 : i32
    return %arg0, %c0_i32 : i32, i32
  }
}

</mosaic_0001>

<llo_original>
// kernel: tpu_custom_call.1
$region0: #{tpu_custom_call.1}
  #allocation0 [shape = 'u32[]', space=smem, size = 0x4, offset = 0x4, fixed_abs, tag = 'smem constant byte address 0x4 - core index']
  #allocation1 [shape = 'u32[144,128]{1,0:T(1,128)}', space=vmem, size = 0x12000, scoped, tag = 'internal scratch']
  %s0 = inlined_call_operand.hbm [shape: f32[16,128], index: 0, kind: input, shape index: {}]
  %s1 = inlined_call_operand.hbm [shape: bf16[128,128], index: 1, kind: input, shape index: {}]
  %s2 = inlined_call_operand.vmem [shape: f32[1,128], index: 2, kind: input, shape index: {}]
  %s3 = inlined_call_operand.hbm [shape: bf16[128,128], index: 3, kind: input, shape index: {}]
  %s4 = inlined_call_operand.vmem [shape: f32[1,128], index: 4, kind: input, shape index: {}]
  %s5 = inlined_call_operand.hbm [shape: f32[16,128], index: 5, kind: output, shape index: {}]
  %s6 = sld [smem:[#allocation0]]
  $region42: #{tpu_custom_call.1} parent=0
    _
  %s8 = ssub.s32 1, %s6
  %s9 = scalar_select 0, %s8, %s6
  $region1: #{tpu_custom_call.1} parent=0
    #allocation2 [shape = 'u8[8192]{0}', space=vmem, size = 0x2000, scoped, tag = 'input window, operand 0, single buffered']
    #allocation3 [shape = 's32[1]{0}', space=sflag, size = 0x4, scoped, tag = 'scoped memory for tpu_custom_call.1']
    #allocation4 [shape = 's32[1]{0}', space=sflag, size = 0x4, scoped, tag = 'scoped memory for tpu_custom_call.1']
    #allocation5 [shape = 'u8[32768]{0}', space=vmem, size = 0x8000, scoped, tag = 'input window, operand 1, single buffered']
    #allocation6 [shape = 's32[1]{0}', space=sflag, size = 0x4, scoped, tag = 'scoped memory for tpu_custom_call.1']
    #allocation7 [shape = 'u8[32768]{0}', space=vmem, size = 0x8000, scoped, tag = 'input window, operand 3, single buffered']
    #allocation8 [shape = 'u8[8192]{0}', space=vmem, size = 0x2000, scoped, tag = 'output window, operand 0, single buffered']
    %10 = vsyncpa [#allocation3], 0
    %11 = vsyncpa [#allocation6], 0
    %12 = vsyncpa [#allocation4], 0
    // Predicated region
    $region2: #{tpu_custom_call.1} parent=1 // pred_check
      _
    $region3: #{tpu_custom_call.1} parent=1 // pred_check_branch
      %14 = sbr.rel (0) target = $region5
    $region4: #{tpu_custom_call.1} parent=1 // pred_region
      %s16 = ssub.s32 256, 256
      %17 = vsyncadd [#allocation3], %s16
      %s18 = sshll.u32 [#allocation2], 4
      %s19 = int_to_ptr.vmem [resolvable:$true] %s18
      %24 = dma.hbm_to_vmem [thread:$0]  %s0, 256, %s19, [#allocation3], 128, 128, 8
    $region5: #{tpu_custom_call.1} parent=1 // pred_fallthru
      _
    // Predicated region
    $region6: #{tpu_custom_call.1} parent=1 // pred_check
      _
    $region7: #{tpu_custom_call.1} parent=1 // pred_check_branch
      %26 = sbr.rel (0) target = $region9
    $region8: #{tpu_custom_call.1} parent=1 // pred_region
      %s28 = ssub.s32 1024, 1024
      %29 = vsyncadd [#allocation6], %s28
      %s30 = sshll.u32 [#allocation5], 4
      %s31 = int_to_ptr.vmem [resolvable:$true] %s30
      %36 = dma.hbm_to_vmem [thread:$0]  %s1, 1024, %s31, [#allocation6], 64, 64, 4
    $region9: #{tpu_custom_call.1} parent=1 // pred_fallthru
      _
    // Predicated region
    $region10: #{tpu_custom_call.1} parent=1 // pred_check
      _
    $region11: #{tpu_custom_call.1} parent=1 // pred_check_branch
      %38 = sbr.rel (0) target = $region13
    $region12: #{tpu_custom_call.1} parent=1 // pred_region
      _
    $region13: #{tpu_custom_call.1} parent=1 // pred_fallthru
      _
    // Predicated region
    $region14: #{tpu_custom_call.1} parent=1 // pred_check
      _
    $region15: #{tpu_custom_call.1} parent=1 // pred_check_branch
      %40 = sbr.rel (0) target = $region17
    $region16: #{tpu_custom_call.1} parent=1 // pred_region
      %s42 = ssub.s32 1024, 1024
      %43 = vsyncadd [#allocation6], %s42
      %s44 = sshll.u32 [#allocation7], 4
      %s45 = int_to_ptr.vmem [resolvable:$true] %s44
      %50 = dma.hbm_to_vmem [thread:$0]  %s3, 1024, %s45, [#allocation6], 64, 64, 4
    $region17: #{tpu_custom_call.1} parent=1 // pred_fallthru
      _
    // Predicated region
    $region18: #{tpu_custom_call.1} parent=1 // pred_check
      _
    $region19: #{tpu_custom_call.1} parent=1 // pred_check_branch
      %52 = sbr.rel (0) target = $region21
    $region20: #{tpu_custom_call.1} parent=1 // pred_region
      _
    $region21: #{tpu_custom_call.1} parent=1 // pred_fallthru
      _
    // Predicated region
    $region22: #{tpu_custom_call.1} parent=1 // pred_check
      _
    $region23: #{tpu_custom_call.1} parent=1 // pred_check_branch
      %54 = sbr.rel (0) target = $region25
    $region24: #{tpu_custom_call.1} parent=1 // pred_region
      %55 = dma.done [#allocation3], 256
    $region25: #{tpu_custom_call.1} parent=1 // pred_fallthru
      _
    // Predicated region
    $region26: #{tpu_custom_call.1} parent=1 // pred_check
      _
    $region27: #{tpu_custom_call.1} parent=1 // pred_check_branch
      %57 = sbr.rel (0) target = $region29
    $region28: #{tpu_custom_call.1} parent=1 // pred_region
      %58 = dma.done [#allocation6], 1024
    $region29: #{tpu_custom_call.1} parent=1 // pred_fallthru
      _
    // Predicated region
    $region30: #{tpu_custom_call.1} parent=1 // pred_check
      _
    $region31: #{tpu_custom_call.1} parent=1 // pred_check_branch
      %60 = sbr.rel (0) target = $region33
    $region32: #{tpu_custom_call.1} parent=1 // pred_region
      %61 = dma.done [#allocation6], 1024
    $region33: #{tpu_custom_call.1} parent=1 // pred_fallthru
      _
    %v63 = vld [vmem:[#allocation2] sm:$0xff]
    %v64 = vld [vmem:[#allocation2 + $0x8] sm:$0xff]
    %v65 = vpack.c.bf16 %v64, %v63
    %v66 = vld [vmem:[#allocation5] sm:$0xf]
    %v67 = vld [vmem:[#allocation5 + $0x4] sm:$0xf]
    %v68 = vld [vmem:[#allocation5 + $0x8] sm:$0xf]
    %v69 = vld [vmem:[#allocation5 + $0xc] sm:$0xf]
    %v70 = vld [vmem:[#allocation5 + $0x10] sm:$0xf]
    %v71 = vld [vmem:[#allocation5 + $0x14] sm:$0xf]
    %v72 = vld [vmem:[#allocation5 + $0x18] sm:$0xf]
    %v73 = vld [vmem:[#allocation5 + $0x1c] sm:$0xf]
    %v74 = vld [vmem:[#allocation5 + $0x20] sm:$0xf]
    %v75 = vld [vmem:[#allocation5 + $0x24] sm:$0xf]
    %v76 = vld [vmem:[#allocation5 + $0x28] sm:$0xf]
    %v77 = vld [vmem:[#allocation5 + $0x2c] sm:$0xf]
    %v78 = vld [vmem:[#allocation5 + $0x30] sm:$0xf]
    %v79 = vld [vmem:[#allocation5 + $0x34] sm:$0xf]
    %v80 = vld [vmem:[#allocation5 + $0x38] sm:$0xf]
    %v81 = vld [vmem:[#allocation5 + $0x3c] sm:$0xf]
    %v82 = vld [vmem:[%s2] sm:$0x1]
    %v84 = vlaneseq
    %v85 = vshrl.u32 %v84, 7
    %v86 = vsub.s32 0, %v85
    %v87 = vrot.slane %v82, %v86
    %v105 = vunpack.c.l.b16 %v66
    %v106 = vunpack.c.l.b16 %v67
    %v107 = vunpack.c.l.b16 %v68
    %v108 = vunpack.c.l.b16 %v69
    %v109 = vunpack.c.l.b16 %v70
    %v110 = vunpack.c.l.b16 %v71
    %v111 = vunpack.c.l.b16 %v72
    %v112 = vunpack.c.l.b16 %v73
    %v113 = vunpack.c.l.b16 %v74
    %v114 = vunpack.c.l.b16 %v75
    %v115 = vunpack.c.l.b16 %v76
    %v116 = vunpack.c.l.b16 %v77
    %v117 = vunpack.c.l.b16 %v78
    %v118 = vunpack.c.l.b16 %v79
    %v119 = vunpack.c.l.b16 %v80
    %v120 = vunpack.c.l.b16 %v81
    %v121 = vpack.c.b16 %v106, %v105
    %v122 = vpack.c.b16 %v108, %v107
    %v123 = vpack.c.b16 %v110, %v109
    %v124 = vpack.c.b16 %v112, %v111
    %v125 = vpack.c.b16 %v114, %v113
    %v126 = vpack.c.b16 %v116, %v115
    %v127 = vpack.c.b16 %v118, %v117
    %v128 = vpack.c.b16 %v120, %v119
    %137 = vmatprep.subr.bf16.mxu0 0
    %138 = vmatpush1.bf16.msra.mxu0 %v121
    %139 = vmatprep.subr.bf16.mxu0 0
    %140 = vmatpush1.bf16.msra.mxu0 %v122
    %141 = vmatprep.subr.bf16.mxu0 0
    %142 = vmatpush1.bf16.msra.mxu0 %v123
    %143 = vmatprep.subr.bf16.mxu0 0
    %144 = vmatpush1.bf16.msra.mxu0 %v124
    %145 = vmatprep.subr.bf16.mxu0 0
    %146 = vmatpush1.bf16.msra.mxu0 %v125
    %147 = vmatprep.subr.bf16.mxu0 0
    %148 = vmatpush1.bf16.msra.mxu0 %v126
    %149 = vmatprep.subr.bf16.mxu0 0
    %150 = vmatpush1.bf16.msra.mxu0 %v127
    %151 = vmatprep.subr.bf16.mxu0 0
    %152 = vmatpush1.bf16.msra.mxu0 %v128
    %153 = vmatprep.subr.bf16.mxu0 0
    %154 = vmatpush1.bf16.msra.mxu0 0
    %155 = vmatprep.subr.bf16.mxu0 0
    %156 = vmatpush1.bf16.msra.mxu0 0
    %157 = vmatprep.subr.bf16.mxu0 0
    %158 = vmatpush1.bf16.msra.mxu0 0
    %159 = vmatprep.subr.bf16.mxu0 0
    %160 = vmatpush1.bf16.msra.mxu0 0
    %161 = vmatprep.subr.bf16.mxu0 0
    %162 = vmatpush1.bf16.msra.mxu0 0
    %163 = vmatprep.subr.bf16.mxu0 0
    %164 = vmatpush1.bf16.msra.mxu0 0
    %165 = vmatprep.subr.bf16.mxu0 0
    %166 = vmatpush1.bf16.msra.mxu0 0
    %167 = vmatprep.subr.bf16.mxu0 0
    %168 = vmatpush1.bf16.msra.mxu0 0
    %169 = vmatprep.mubr.bf16.mxu0 0
    %170 = vmatmul.mubr.bf16.gmra.mrb[0].mxu0 %v65
    %v171 = vpop.f32.mrb[0].mxu0
    %v172 = vadd.f32 %v87, %v171
    %v173 = vpop.f32.mrb[0].mxu0
    %v174 = vpop.f32.mrb[0].mxu0
    %v175 = vadd.f32 %v87, %v174
    %v176 = vpop.f32.mrb[0].mxu0
    %177 = vdwg.mxu0
    %v178 = vtanh.pop %v172
    %v179 = vtanh.pop %v175
    %v180 = vpack.c.bf16 %v179, %v178
    %v181 = vld [vmem:[#allocation7] sm:$0xf]
    %v182 = vld [vmem:[#allocation7 + $0x4] sm:$0xf]
    %v183 = vld [vmem:[#allocation7 + $0x8] sm:$0xf]
    %v184 = vld [vmem:[#allocation7 + $0xc] sm:$0xf]
    %v185 = vld [vmem:[#allocation7 + $0x10] sm:$0xf]
    %v186 = vld [vmem:[#allocation7 + $0x14] sm:$0xf]
    %v187 = vld [vmem:[#allocation7 + $0x18] sm:$0xf]
    %v188 = vld [vmem:[#allocation7 + $0x1c] sm:$0xf]
    %v189 = vld [vmem:[#allocation7 + $0x20] sm:$0xf]
    %v190 = vld [vmem:[#allocation7 + $0x24] sm:$0xf]
    %v191 = vld [vmem:[#allocation7 + $0x28] sm:$0xf]
    %v192 = vld [vmem:[#allocation7 + $0x2c] sm:$0xf]
    %v193 = vld [vmem:[#allocation7 + $0x30] sm:$0xf]
    %v194 = vld [vmem:[#allocation7 + $0x34] sm:$0xf]
    %v195 = vld [vmem:[#allocation7 + $0x38] sm:$0xf]
    %v196 = vld [vmem:[#allocation7 + $0x3c] sm:$0xf]
    %v197 = vld [vmem:[%s4] sm:$0x1]
    %v199 = vlaneseq
    %v200 = vshrl.u32 %v199, 7
    %v201 = vsub.s32 0, %v200
    %v202 = vrot.slane %v197, %v201
    %v220 = vunpack.c.l.b16 %v181
    %v221 = vunpack.c.l.b16 %v182
    %v222 = vunpack.c.l.b16 %v183
    %v223 = vunpack.c.l.b16 %v184
    %v224 = vunpack.c.l.b16 %v185
    %v225 = vunpack.c.l.b16 %v186
    %v226 = vunpack.c.l.b16 %v187
    %v227 = vunpack.c.l.b16 %v188
    %v228 = vunpack.c.l.b16 %v189
    %v229 = vunpack.c.l.b16 %v190
    %v230 = vunpack.c.l.b16 %v191
    %v231 = vunpack.c.l.b16 %v192
    %v232 = vunpack.c.l.b16 %v193
    %v233 = vunpack.c.l.b16 %v194
    %v234 = vunpack.c.l.b16 %v195
    %v235 = vunpack.c.l.b16 %v196
    %v236 = vpack.c.b16 %v221, %v220
    %v237 = vpack.c.b16 %v223, %v222
    %v238 = vpack.c.b16 %v225, %v224
    %v239 = vpack.c.b16 %v227, %v226
    %v240 = vpack.c.b16 %v229, %v228
    %v241 = vpack.c.b16 %v231, %v230
    %v242 = vpack.c.b16 %v233, %v232
    %v243 = vpack.c.b16 %v235, %v234
    %252 = vmatprep.subr.bf16.mxu0 0
    %253 = vmatpush1.bf16.msra.mxu0 %v236
    %254 = vmatprep.subr.bf16.mxu0 0
    %255 = vmatpush1.bf16.msra.mxu0 %v237
    %256 = vmatprep.subr.bf16.mxu0 0
    %257 = vmatpush1.bf16.msra.mxu0 %v238
    %258 = vmatprep.subr.bf16.mxu0 0
    %259 = vmatpush1.bf16.msra.mxu0 %v239
    %260 = vmatprep.subr.bf16.mxu0 0
    %261 = vmatpush1.bf16.msra.mxu0 %v240
    %262 = vmatprep.subr.bf16.mxu0 0
    %263 = vmatpush1.bf16.msra.mxu0 %v241
    %264 = vmatprep.subr.bf16.mxu0 0
    %265 = vmatpush1.bf16.msra.mxu0 %v242
    %266 = vmatprep.subr.bf16.mxu0 0
    %267 = vmatpush1.bf16.msra.mxu0 %v243
    %268 = vmatprep.subr.bf16.mxu0 0
    %269 = vmatpush1.bf16.msra.mxu0 0
    %270 = vmatprep.subr.bf16.mxu0 0
    %271 = vmatpush1.bf16.msra.mxu0 0
    %272 = vmatprep.subr.bf16.mxu0 0
    %273 = vmatpush1.bf16.msra.mxu0 0
    %274 = vmatprep.subr.bf16.mxu0 0
    %275 = vmatpush1.bf16.msra.mxu0 0
    %276 = vmatprep.subr.bf16.mxu0 0
    %277 = vmatpush1.bf16.msra.mxu0 0
    %278 = vmatprep.subr.bf16.mxu0 0
    %279 = vmatpush1.bf16.msra.mxu0 0
    %280 = vmatprep.subr.bf16.mxu0 0
    %281 = vmatpush1.bf16.msra.mxu0 0
    %282 = vmatprep.subr.bf16.mxu0 0
    %283 = vmatpush1.bf16.msra.mxu0 0
    %284 = vmatprep.mubr.bf16.mxu0 0
    %285 = vmatmul.mubr.bf16.gmra.mrb[0].mxu0 %v180
    %v286 = vpop.f32.mrb[0].mxu0
    %v287 = vadd.f32 %v202, %v286
    %v288 = vpop.f32.mrb[0].mxu0
    %v289 = vpop.f32.mrb[0].mxu0
    %v290 = vadd.f32 %v202, %v289
    %v291 = vpop.f32.mrb[0].mxu0
    %292 = vdwg.mxu0
    %293 = vst [vmem:[#allocation8] sm:$0xff] %v287
    %294 = vst [vmem:[#allocation8 + $0x8] sm:$0xff] %v290
    // Predicated region
    $region34: #{tpu_custom_call.1} parent=1 // pred_check
      _
    $region35: #{tpu_custom_call.1} parent=1 // pred_check_branch
      %296 = sbr.rel (0) target = $region37
    $region36: #{tpu_custom_call.1} parent=1 // pred_region
      %s298 = ssub.s32 256, 256
      %299 = vsyncadd [#allocation4], %s298
      %s300 = sshll.u32 [#allocation8], 4
      %s301 = int_to_ptr.vmem [resolvable:$true] %s300
      %306 = dma.vmem_to_hbm [thread:$0]  %s301, 256, %s5, [#allocation4], 128, 128, 8
    $region37: #{tpu_custom_call.1} parent=1 // pred_fallthru
      _
    // Predicated region
    $region38: #{tpu_custom_call.1} parent=1 // pred_check
      _
    $region39: #{tpu_custom_call.1} parent=1 // pred_check_branch
      %308 = sbr.rel (0) target = $region41
    $region40: #{tpu_custom_call.1} parent=1 // pred_region
      %309 = dma.done [#allocation4], 256
    $region41: #{tpu_custom_call.1} parent=1 // pred_fallthru
      _
    %310 = vsyncpa [#allocation3], 1
    %311 = vsyncpa [#allocation6], 1
    %312 = vsyncpa [#allocation4], 1

</llo_original>
